<compile_context>
chip_gen: v7x
topology: tpu7x:2x2x1
jax: 0.10.0
libtpu: 0.0.40
codegen_flags: <defaults>
</compile_context>

<pallas_src>
import functools

import jax
import jax.numpy as jnp
from jax.experimental import pallas as pl
from jax.experimental.pallas import tpu as pltpu


# --------------------------------------------------------------------------- #
# Kernel                                                                       #
# --------------------------------------------------------------------------- #
def _dura_w_kernel(h_ref, r_ref, t_ref, o_ref, *, rows_total, tile_rows, ragged):
    # Grid = (col_blocks [parallel], row_blocks [arbitrary, reduction]).
    i = pl.program_id(1)  # row-block index (reduction axis, last in grid)

    @pl.when(i == 0)
    def _init():
        o_ref[...] = jnp.zeros_like(o_ref)

    h = h_ref[...].astype(jnp.float32)
    r = r_ref[...].astype(jnp.float32)
    t = t_ref[...].astype(jnp.float32)

    # (h^2 + t^2) * (0.5 + 1.5 r^2) == 0.5*(h^2+t^2) + 1.5*(h^2 r^2 + t^2 r^2)
    expr = (h * h + t * t) * (0.5 + 1.5 * (r * r))

    if ragged:
        last = pl.num_programs(1) - 1

        @pl.when(i != last)
        def _full_block():
            o_ref[...] += jnp.sum(expr, axis=0, keepdims=True)

        @pl.when(i == last)
        def _tail_block():
            # (tm, 1) iota -> broadcast compare; select-after-compute keeps any
            # Inf/NaN in the padded rows from leaking into the sum.
            row = jax.lax.broadcasted_iota(jnp.int32, (tile_rows, 1), 0)
            valid = (i * tile_rows + row) < rows_total
            masked = jnp.where(valid, expr, 0.0)
            o_ref[...] += jnp.sum(masked, axis=0, keepdims=True)
    else:
        o_ref[...] += jnp.sum(expr, axis=0, keepdims=True)


# --------------------------------------------------------------------------- #
# Tiling / VMEM planning                                                       #
# --------------------------------------------------------------------------- #
def _vmem_plan():
    """Per-chip (input_budget_bytes, vmem_limit_bytes)."""
    cap = 64 << 20  # conservative fallback: v7x per-TC VMEM
    try:
        info = pltpu.get_tpu_info()
        cap = int(getattr(info, "vmem_capacity_bytes", cap))
    except Exception:
        pass
    if cap >= (128 << 20):
        # v5e / v6e: 128 MiB physical VMEM per TensorCore.
        return 40 << 20, 64 << 20
    # v7x (64 MiB per TC) or unknown: keep total footprint well under 64 MiB.
    return 24 << 20, 48 << 20


def _round_up(x, m):
    return ((x + m - 1) // m) * m


def _pick_col_tile(D, max_td=2048):
    """Largest 128-multiple column tile that exactly divides D (so no column
    masking is ever needed); D itself if it is small or not 128-aligned."""
    if D <= max_td or D % 128 != 0:
        return D
    for td in range(max_td, 127, -128):
        if D % td == 0:
            return td
    return D


def _pick_batch_tile(B, td, itemsize, input_budget_bytes, max_rows=8192):
    """Largest row tile (multiple of the packed-sublane extent for the dtype)
    such that 3 double-buffered input tiles fit the per-chip input budget."""
    sub = max(8, 32 // itemsize)  # 8 for f32, 16 for bf16, 32 for int8/fp8
    if B < sub:
        return B  # full-extent block satisfies the (8,128) rule
    bytes_per_row = 3 * 2 * td * itemsize  # 3 inputs x 2 pipeline buffers
    tm = input_budget_bytes // max(bytes_per_row, 1)
    tm = (tm // sub) * sub
    tm = min(tm, max_rows, _round_up(B, sub))
    return max(tm, sub)


# --------------------------------------------------------------------------- #
# Wrapper                                                                      #
# --------------------------------------------------------------------------- #
def dura_w(h: jax.Array, r: jax.Array, t: jax.Array, weight: float) -> jax.Array:
    """DURA_W regularizer: returns a scalar (float32)."""
    assert h.shape == r.shape == t.shape and h.ndim == 2
    B, D = h.shape
    itemsize = jnp.dtype(h.dtype).itemsize

    input_budget, vmem_limit = _vmem_plan()
    td = _pick_col_tile(D)
    tm = _pick_batch_tile(B, td, itemsize, input_budget)

    ncol = D // td
    nrow = pl.cdiv(B, tm)
    ragged = (B % tm) != 0

    in_spec = pl.BlockSpec((tm, td), lambda j, i: (i, j))
    out_spec = pl.BlockSpec((1, td), lambda j, i: (0, j))

    partial = pl.pallas_call(
        functools.partial(
            _dura_w_kernel, rows_total=B, tile_rows=tm, ragged=ragged
        ),
        out_shape=jax.ShapeDtypeStruct((1, D), jnp.float32),
        grid_spec=pltpu.PrefetchScalarGridSpec(
            num_scalar_prefetch=0,
            grid=(ncol, nrow),  # reduction (row) axis last
            in_specs=[in_spec, in_spec, in_spec],
            out_specs=out_spec,
        ),
        compiler_params=pltpu.CompilerParams(
            dimension_semantics=("parallel", "arbitrary"),
            vmem_limit_bytes=int(vmem_limit),
        ),
        cost_estimate=pl.CostEstimate(
            flops=6 * B * D,
            transcendentals=0,
            bytes_accessed=3 * B * D * itemsize + D * 4,
        ),
    )(h, r, t)

    # Tiny epilogue: (1, D) lane sum + final scaling (fused by XLA).
    norm = jnp.sum(partial)
    return (jnp.float32(weight) * norm) / jnp.float32(B)


def dura_w_reference(h, r, t, weight):
    h = h.astype(jnp.float32)
    r = r.astype(jnp.float32)
    t = t.astype(jnp.float32)
    norm = 0.5 * jnp.sum(t**2 + h**2) + 1.5 * jnp.sum(h**2 * r**2 + t**2 * r**2)
    return weight * norm / h.shape[0]


# --------------------------------------------------------------------------- #
# Self-test                                                                    #
# --------------------------------------------------------------------------- #
if __name__ == "__main__":
    key = jax.random.PRNGKey(0)
    weight = 0.1

    # Case 1: aligned batch (single block, no masking).
    B, D = 16, 256
    k_h, k_r, k_t, key = jax.random.split(key, 4)
    h = jax.random.normal(k_h, (B, D), dtype=jnp.float32)
    r = jax.random.normal(k_r, (B, D), dtype=jnp.float32)
    t = jax.random.normal(k_t, (B, D), dtype=jnp.float32)
    out = jax.block_until_ready(dura_w(h, r, t, weight))
    ref = dura_w_reference(h, r, t, weight)
    assert jnp.allclose(out, ref, rtol=1e-5, atol=1e-5), (out, ref)

    # Case 2: ragged batch, f32 (exercises the pl.when-gated tail mask).
    B2, D2 = 20, 128
    k_h, k_r, k_t, key = jax.random.split(key, 4)
    h2 = jax.random.normal(k_h, (B2, D2), dtype=jnp.float32)
    r2 = jax.random.normal(k_r, (B2, D2), dtype=jnp.float32)
    t2 = jax.random.normal(k_t, (B2, D2), dtype=jnp.float32)
    out2 = jax.block_until_ready(dura_w(h2, r2, t2, weight))
    ref2 = dura_w_reference(h2, r2, t2, weight)
    assert jnp.allclose(out2, ref2, rtol=1e-5, atol=1e-5), (out2, ref2)

    # Case 3: ragged batch, bf16 (exercises the 16-row sublane multiple +
    # in-kernel f32 upcast/accumulation).
    B3, D3 = 20, 128
    k_h, k_r, k_t, key = jax.random.split(key, 4)
    h3 = jax.random.normal(k_h, (B3, D3), dtype=jnp.bfloat16)
    r3 = jax.random.normal(k_r, (B3, D3), dtype=jnp.bfloat16)
    t3 = jax.random.normal(k_t, (B3, D3), dtype=jnp.bfloat16)
    out3 = jax.block_until_ready(dura_w(h3, r3, t3, weight))
    ref3 = dura_w_reference(h3, r3, t3, weight)
    assert jnp.allclose(out3, ref3, rtol=1e-3, atol=1e-3), (out3, ref3)

    print("KERNEL_OK")
</pallas_src>

<mosaic_0001>
module attributes {stable_mosaic.version = 11 : i64} {
  func.func @_dura_w_kernel(%arg0: i32, %arg1: i32, %arg2: memref<16x256xf32, #tpu.memory_space<vmem>>, %arg3: memref<16x256xf32, #tpu.memory_space<vmem>>, %arg4: memref<16x256xf32, #tpu.memory_space<vmem>>, %arg5: memref<1x256xf32, #tpu.memory_space<vmem>>) attributes {dimension_semantics = [#tpu.dimension_semantics<parallel>, #tpu.dimension_semantics<arbitrary>], iteration_bounds = array<i64: 1, 1>, scalar_prefetch = 0 : i64, scratch_operands = 0 : i64, tpu.core_type = #tpu.core_type<tc>, window_params = [{transform_indices = @transform_0, window_bounds = array<i64: 16, 256>}, {transform_indices = @transform_1, window_bounds = array<i64: 16, 256>}, {transform_indices = @transform_2, window_bounds = array<i64: 16, 256>}, {transform_indices = @transform_3, window_bounds = array<i64: 1, 256>}]} {
    %c0_i32 = arith.constant 0 : i32
    %0 = arith.cmpi eq, %arg1, %c0_i32 : i32
    %1 = arith.extui %0 : i1 to i32
    %c0_i32_0 = arith.constant 0 : i32
    %2 = arith.cmpi ne, %1, %c0_i32_0 : i32
    scf.if %2 {
      %cst_12 = arith.constant 0.000000e+00 : f32
      %20 = vector.broadcast %cst_12 : f32 to vector<1x256xf32>
      %c0_13 = arith.constant 0 : index
      %c0_14 = arith.constant 0 : index
      %21 = vector.load %arg5[%c0_13, %c0_14] : memref<1x256xf32, #tpu.memory_space<vmem>>, vector<1x256xf32>
      tpu.vector_store %arg5[%c0_13, %c0_14], %20 {strides = array<i32>} : memref<1x256xf32, #tpu.memory_space<vmem>>, vector<1x256xf32>,
    } else {
    }
    %c0 = arith.constant 0 : index
    %c0_1 = arith.constant 0 : index
    %3 = vector.load %arg2[%c0, %c0_1] : memref<16x256xf32, #tpu.memory_space<vmem>>, vector<16x256xf32>
    %c0_2 = arith.constant 0 : index
    %c0_3 = arith.constant 0 : index
    %4 = vector.load %arg3[%c0_2, %c0_3] : memref<16x256xf32, #tpu.memory_space<vmem>>, vector<16x256xf32>
    %c0_4 = arith.constant 0 : index
    %c0_5 = arith.constant 0 : index
    %5 = vector.load %arg4[%c0_4, %c0_5] : memref<16x256xf32, #tpu.memory_space<vmem>>, vector<16x256xf32>
    %6 = arith.mulf %3, %3 : vector<16x256xf32>
    %7 = arith.mulf %5, %5 : vector<16x256xf32>
    %8 = arith.addf %6, %7 : vector<16x256xf32>
    %9 = arith.mulf %4, %4 : vector<16x256xf32>
    %cst = arith.constant 1.500000e+00 : f32
    %10 = vector.broadcast %cst : f32 to vector<16x256xf32>
    %11 = arith.mulf %10, %9 : vector<16x256xf32>
    %cst_6 = arith.constant 5.000000e-01 : f32
    %12 = vector.broadcast %cst_6 : f32 to vector<16x256xf32>
    %13 = arith.addf %12, %11 : vector<16x256xf32>
    %14 = arith.mulf %8, %13 : vector<16x256xf32>
    %c0_7 = arith.constant 0 : index
    %c0_8 = arith.constant 0 : index
    %15 = vector.load %arg5[%c0_7, %c0_8] : memref<1x256xf32, #tpu.memory_space<vmem>>, vector<1x256xf32>
    %cst_9 = arith.constant dense<0.000000e+00> : vector<256xf32>
    %16 = vector.multi_reduction <add>, %14, %cst_9 [0] : vector<16x256xf32> to vector<256xf32>
    %17 = vector.shape_cast %16 : vector<256xf32> to vector<1x256xf32>
    %18 = arith.addf %15, %17 : vector<1x256xf32>
    %c0_10 = arith.constant 0 : index
    %c0_11 = arith.constant 0 : index
    %19 = vector.load %arg5[%c0_10, %c0_11] : memref<1x256xf32, #tpu.memory_space<vmem>>, vector<1x256xf32>
    tpu.vector_store %arg5[%c0_10, %c0_11], %18 {strides = array<i32>} : memref<1x256xf32, #tpu.memory_space<vmem>>, vector<1x256xf32>,
    return
  }
  func.func @transform_0(%arg0: i32, %arg1: i32) -> (i32, i32) {
    %c0_i32 = arith.constant 0 : i32
    return %arg1, %arg0 : i32, i32
  }
  func.func @transform_1(%arg0: i32, %arg1: i32) -> (i32, i32) {
    %c0_i32 = arith.constant 0 : i32
    return %arg1, %arg0 : i32, i32
  }
  func.func @transform_2(%arg0: i32, %arg1: i32) -> (i32, i32) {
    %c0_i32 = arith.constant 0 : i32
    return %arg1, %arg0 : i32, i32
  }
  func.func @transform_3(%arg0: i32, %arg1: i32) -> (i32, i32) {
    %c0_i32 = arith.constant 0 : i32
    %c0_i32_0 = arith.constant 0 : i32
    return %c0_i32, %arg0 : i32, i32
  }
}

</mosaic_0001>

<llo_original>
// kernel: tpu_custom_call.1
$region0: #{tpu_custom_call.1}
  #allocation0 [shape = 'u32[]', space=smem, size = 0x4, offset = 0x4, fixed_abs, tag = 'smem constant byte address 0x4 - core index']
  #allocation1 [shape = 'u32[144,128]{1,0:T(1,128)}', space=vmem, size = 0x12000, scoped, tag = 'internal scratch']
  %s0 = inlined_call_operand.hbm [shape: f32[16,256], index: 0, kind: input, shape index: {}]
  %s1 = inlined_call_operand.hbm [shape: f32[16,256], index: 1, kind: input, shape index: {}]
  %s2 = inlined_call_operand.hbm [shape: f32[16,256], index: 2, kind: input, shape index: {}]
  %s3 = inlined_call_operand.hbm [shape: f32[1,256], index: 3, kind: output, shape index: {}]
  %s4 = sld [smem:[#allocation0]]
  $region38: #{tpu_custom_call.1} parent=0
    _
  %s6 = ssub.s32 1, %s4
  %s7 = scalar_select 0, %s6, %s4
  $region1: #{tpu_custom_call.1} parent=0
    #allocation2 [shape = 'u8[16384]{0}', space=vmem, size = 0x4000, scoped, tag = 'input window, operand 0, single buffered']
    #allocation3 [shape = 's32[1]{0}', space=sflag, size = 0x4, scoped, tag = 'scoped memory for tpu_custom_call.1']
    #allocation4 [shape = 's32[1]{0}', space=sflag, size = 0x4, scoped, tag = 'scoped memory for tpu_custom_call.1']
    #allocation5 [shape = 'u8[16384]{0}', space=vmem, size = 0x4000, scoped, tag = 'input window, operand 1, single buffered']
    #allocation6 [shape = 's32[1]{0}', space=sflag, size = 0x4, scoped, tag = 'scoped memory for tpu_custom_call.1']
    #allocation7 [shape = 'u8[16384]{0}', space=vmem, size = 0x4000, scoped, tag = 'input window, operand 2, single buffered']
    #allocation8 [shape = 'u8[1024]{0}', space=vmem, size = 0x400, scoped, tag = 'output window, operand 0, single buffered']
    %8 = vsyncpa [#allocation3], 0
    %9 = vsyncpa [#allocation6], 0
    %10 = vsyncpa [#allocation4], 0
    // Predicated region
    $region2: #{tpu_custom_call.1} parent=1 // pred_check
      _
    $region3: #{tpu_custom_call.1} parent=1 // pred_check_branch
      %12 = sbr.rel (0) target = $region5
    $region4: #{tpu_custom_call.1} parent=1 // pred_region
      %s14 = ssub.s32 512, 512
      %15 = vsyncadd [#allocation3], %s14
      %s16 = sshll.u32 [#allocation2], 4
      %s17 = int_to_ptr.vmem [resolvable:$true] %s16
      %22 = dma.hbm_to_vmem [thread:$0]  %s0, 512, %s17, [#allocation3], 256, 256, 16
    $region5: #{tpu_custom_call.1} parent=1 // pred_fallthru
      _
    // Predicated region
    $region6: #{tpu_custom_call.1} parent=1 // pred_check
      _
    $region7: #{tpu_custom_call.1} parent=1 // pred_check_branch
      %24 = sbr.rel (0) target = $region9
    $region8: #{tpu_custom_call.1} parent=1 // pred_region
      %s26 = ssub.s32 512, 512
      %27 = vsyncadd [#allocation6], %s26
      %s28 = sshll.u32 [#allocation5], 4
      %s29 = int_to_ptr.vmem [resolvable:$true] %s28
      %34 = dma.hbm_to_vmem [thread:$0]  %s1, 512, %s29, [#allocation6], 256, 256, 16
    $region9: #{tpu_custom_call.1} parent=1 // pred_fallthru
      _
    // Predicated region
    $region10: #{tpu_custom_call.1} parent=1 // pred_check
      _
    $region11: #{tpu_custom_call.1} parent=1 // pred_check_branch
      %36 = sbr.rel (0) target = $region13
    $region12: #{tpu_custom_call.1} parent=1 // pred_region
      %s38 = ssub.s32 512, 512
      %39 = vsyncadd [#allocation6], %s38
      %s40 = sshll.u32 [#allocation7], 4
      %s41 = int_to_ptr.vmem [resolvable:$true] %s40
      %46 = dma.hbm_to_vmem [thread:$0]  %s2, 512, %s41, [#allocation6], 256, 256, 16
    $region13: #{tpu_custom_call.1} parent=1 // pred_fallthru
      _
    // Predicated region
    $region14: #{tpu_custom_call.1} parent=1 // pred_check
      _
    $region15: #{tpu_custom_call.1} parent=1 // pred_check_branch
      %48 = sbr.rel (0) target = $region17
    $region16: #{tpu_custom_call.1} parent=1 // pred_region
      %49 = dma.done [#allocation3], 512
    $region17: #{tpu_custom_call.1} parent=1 // pred_fallthru
      _
    // Predicated region
    $region18: #{tpu_custom_call.1} parent=1 // pred_check
      _
    $region19: #{tpu_custom_call.1} parent=1 // pred_check_branch
      %51 = sbr.rel (0) target = $region21
    $region20: #{tpu_custom_call.1} parent=1 // pred_region
      %52 = dma.done [#allocation6], 512
    $region21: #{tpu_custom_call.1} parent=1 // pred_fallthru
      _
    // Predicated region
    $region22: #{tpu_custom_call.1} parent=1 // pred_check
      _
    $region23: #{tpu_custom_call.1} parent=1 // pred_check_branch
      %54 = sbr.rel (0) target = $region25
    $region24: #{tpu_custom_call.1} parent=1 // pred_region
      %55 = dma.done [#allocation6], 512
    $region25: #{tpu_custom_call.1} parent=1 // pred_fallthru
      _
    %p56 = scmp.eq.s32.totalorder 0, 0
    // Predicated region
    $region26: #{tpu_custom_call.1} parent=1 // pred_check
      %p57 = pneg %p56
    $region27: #{tpu_custom_call.1} parent=1 // pred_check_branch
      %59 = sbr.rel (%p57) target = $region29
    $region28: #{tpu_custom_call.1} parent=1 // pred_region
      %v60 = vlaneseq
      %vm61 = vcmp.ge.s32.totalorder %v60, 0
      %vm62 = vcmp.lt.s32.totalorder %v60, 256
      %vm63 = vmand %vm61, %vm62
      %64 = vst.msk [vmem:[#allocation8] sm:$0x3] %vm63, 0.0
    $region29: #{tpu_custom_call.1} parent=1 // pred_fallthru
      _
    %v65 = vld [vmem:[#allocation2] sm:$0xff]
    %v66 = vld [vmem:[#allocation2 + $0x8] sm:$0xff]
    %v67 = vld [vmem:[#allocation2 + $0x10] sm:$0xff]
    %v68 = vld [vmem:[#allocation2 + $0x18] sm:$0xff]
    %v69 = vld [vmem:[#allocation5] sm:$0xff]
    %v70 = vld [vmem:[#allocation5 + $0x8] sm:$0xff]
    %v71 = vld [vmem:[#allocation5 + $0x10] sm:$0xff]
    %v72 = vld [vmem:[#allocation5 + $0x18] sm:$0xff]
    %v73 = vld [vmem:[#allocation7] sm:$0xff]
    %v74 = vld [vmem:[#allocation7 + $0x8] sm:$0xff]
    %v75 = vld [vmem:[#allocation7 + $0x10] sm:$0xff]
    %v76 = vld [vmem:[#allocation7 + $0x18] sm:$0xff]
    %v77 = vmul.f32 %v65, %v65
    %v78 = vmul.f32 %v66, %v66
    %v79 = vmul.f32 %v67, %v67
    %v80 = vmul.f32 %v68, %v68
    %v81 = vmul.f32 %v73, %v73
    %v82 = vmul.f32 %v74, %v74
    %v83 = vmul.f32 %v75, %v75
    %v84 = vmul.f32 %v76, %v76
    %v85 = vadd.f32 %v77, %v81
    %v86 = vadd.f32 %v78, %v82
    %v87 = vadd.f32 %v79, %v83
    %v88 = vadd.f32 %v80, %v84
    %v89 = vmul.f32 %v69, %v69
    %v90 = vmul.f32 %v70, %v70
    %v91 = vmul.f32 %v71, %v71
    %v92 = vmul.f32 %v72, %v72
    %v93 = vmul.f32 %v89, 1.5
    %v94 = vmul.f32 %v90, 1.5
    %v95 = vmul.f32 %v91, 1.5
    %v96 = vmul.f32 %v92, 1.5
    %v97 = vadd.f32 %v93, 0.5
    %v98 = vadd.f32 %v94, 0.5
    %v99 = vadd.f32 %v95, 0.5
    %v100 = vadd.f32 %v96, 0.5
    %v101 = vmul.f32 %v85, %v97
    %v102 = vmul.f32 %v86, %v98
    %v103 = vmul.f32 %v87, %v99
    %v104 = vmul.f32 %v88, %v100
    %v105 = vld [vmem:[#allocation8] sm:$0x3]
    %v106 = vadd.f32 %v101, %v103
    %v107 = vrot.slane %v106, 4
    %v108 = vadd.f32 %v106, %v107
    %v109 = vrot.slane %v108, 2
    %v110 = vadd.f32 %v108, %v109
    %v111 = vrot.slane %v110, 1
    %v112 = vadd.f32 %v110, %v111
    %v113 = vadd.f32 %v102, %v104
    %v114 = vrot.slane %v113, 4
    %v115 = vadd.f32 %v113, %v114
    %v116 = vrot.slane %v115, 2
    %v117 = vadd.f32 %v115, %v116
    %v118 = vrot.slane %v117, 1
    %v119 = vadd.f32 %v117, %v118
    %v122 = vcombine.low %v112, %v119
    %v124 = vunpack.c.l.s4 1966171168
    %v125 = vunpack.c.0.s8 %v124
    %v126 = vlaneseq
    %v127 = vshrl.u32 %v126, 7
    %v128 = vsub.s32 %v125, %v127
    %v129 = vrot.slane %v122, %v128
    %v131 = vunpack.c.l.s4 1966171168
    %v132 = vunpack.c.0.s8 %v131
    %v133 = vlaneseq
    %v134 = vshrl.u32 %v133, 7
    %v135 = vsub.s32 %v132, %v134
    %v136 = vrot.slane %v129, %v135
    %v138 = vadd.f32 %v105, %v136
    %v139 = vlaneseq
    %vm140 = vcmp.ge.s32.totalorder %v139, 0
    %vm141 = vcmp.lt.s32.totalorder %v139, 256
    %vm142 = vmand %vm140, %vm141
    %143 = vst.msk [vmem:[#allocation8] sm:$0x3] %vm142, %v138
    // Predicated region
    $region30: #{tpu_custom_call.1} parent=1 // pred_check
      _
    $region31: #{tpu_custom_call.1} parent=1 // pred_check_branch
      %145 = sbr.rel (0) target = $region33
    $region32: #{tpu_custom_call.1} parent=1 // pred_region
      %s147 = ssub.s32 32, 32
      %148 = vsyncadd [#allocation4], %s147
      %s150 = sshll.u32 [#allocation8], 4
      %s151 = int_to_ptr.vmem [resolvable:$true] %s150
      %153 = dma.vmem_to_hbm [thread:$0]  %s151, 32, %s3, [#allocation4]
    $region33: #{tpu_custom_call.1} parent=1 // pred_fallthru
      _
    // Predicated region
    $region34: #{tpu_custom_call.1} parent=1 // pred_check
      _
    $region35: #{tpu_custom_call.1} parent=1 // pred_check_branch
      %155 = sbr.rel (0) target = $region37
    $region36: #{tpu_custom_call.1} parent=1 // pred_region
      %156 = dma.done [#allocation4], 32
    $region37: #{tpu_custom_call.1} parent=1 // pred_fallthru
      _
    %157 = vsyncpa [#allocation3], 1
    %158 = vsyncpa [#allocation6], 1
    %159 = vsyncpa [#allocation4], 1

</llo_original>
